<compile_context>
chip_gen: v5e
topology: v5e:2x2
jax: 0.10.0
libtpu: 0.0.40
codegen_flags: <defaults>
</compile_context>

<pallas_src>
import jax
import jax.numpy as jnp
from jax.experimental import pallas as pl
from jax.experimental.pallas import tpu as pltpu

IN_DIM = 784
HID = 128
OUT_DIM = 10
OUT_PAD = 128            # lane-dense padded output width (one full lane group)

_V7X_MIN_TILES = 4       # target >=4 batch tiles so both v7x TCs get grid work
_MIN_SPLIT_ROWS = 512    # only split when each tile stays >= 512 rows (HBM roofline)
_VMEM_LIMIT = 48 * 1024 * 1024  # covers 2x(2048x784 f32 x) + out + temps on all gens


def mlp_kernel(x_ref, w1_ref, b1_ref, w2_ref, b2_ref, w3_ref, b3_ref, o_ref):
    # Fused 3-layer MLP.  x arrives as f32 from HBM; single bf16 cast in-register
    # before each MXU matmul, f32 accumulation, f32 bias+ReLU epilogues.
    x = x_ref[...].astype(jnp.bfloat16)                                    # (tm, 784)
    h1 = jnp.dot(x, w1_ref[...], preferred_element_type=jnp.float32) + b1_ref[...]
    h1 = jnp.maximum(h1, 0.0).astype(jnp.bfloat16)                         # (tm, 128)
    h2 = jnp.dot(h1, w2_ref[...], preferred_element_type=jnp.float32) + b2_ref[...]
    h2 = jnp.maximum(h2, 0.0).astype(jnp.bfloat16)                         # (tm, 128)
    o_ref[...] = (
        jnp.dot(h2, w3_ref[...], preferred_element_type=jnp.float32) + b3_ref[...]
    )                                                                      # (tm, 128) f32


def _round_up(n, m):
    return ((n + m - 1) // m) * m


def alicenet_forward(x, params, *, tm=2048):
    """x: (B, 784) float32.  params: dict of w1,b1,w2,b2,w3,b3 (f32, (in,out) weights)."""
    B = x.shape[0]

    # bf16 weights for the MXU path; biases stay f32 (tiny, resident in VMEM).
    w1 = params["w1"].astype(jnp.bfloat16)
    w2 = params["w2"].astype(jnp.bfloat16)
    w3 = params["w3"].astype(jnp.bfloat16)
    b1 = params["b1"].astype(jnp.float32)
    b2 = params["b2"].astype(jnp.float32)
    b3 = params["b3"].astype(jnp.float32)

    # Lane-dense output: pad fc3 to 128 output features (extra columns are zero).
    w3p = jnp.zeros((HID, OUT_PAD), jnp.bfloat16).at[:, :OUT_DIM].set(w3)
    b3p = jnp.zeros((1, OUT_PAD), jnp.float32).at[:, :OUT_DIM].set(b3)

    # Batch tiling: never exceed the (8-aligned) batch; for big batches cap the tile
    # so the grid has >= _V7X_MIN_TILES entries (v7x dual-TC sharding).
    tm_eff = min(tm, _round_up(B, 8))
    if B >= _V7X_MIN_TILES * _MIN_SPLIT_ROWS:
        tm_eff = min(tm_eff, _round_up(pl.cdiv(B, _V7X_MIN_TILES), 8))

    grid = (pl.cdiv(B, tm_eff),)  # remainder tile handled by masked OOB stores
    out = pl.pallas_call(
        mlp_kernel,
        out_shape=jax.ShapeDtypeStruct((B, OUT_PAD), jnp.float32),
        grid_spec=pltpu.PrefetchScalarGridSpec(
            num_scalar_prefetch=0,
            grid=grid,
            in_specs=[
                pl.BlockSpec((tm_eff, IN_DIM), lambda i: (i, 0)),   # x tile (streamed, f32)
                pl.BlockSpec((IN_DIM, HID), lambda i: (0, 0)),      # w1 (resident)
                pl.BlockSpec((1, HID), lambda i: (0, 0)),           # b1
                pl.BlockSpec((HID, HID), lambda i: (0, 0)),         # w2
                pl.BlockSpec((1, HID), lambda i: (0, 0)),           # b2
                pl.BlockSpec((HID, OUT_PAD), lambda i: (0, 0)),     # w3 (lane-padded)
                pl.BlockSpec((1, OUT_PAD), lambda i: (0, 0)),       # b3 (lane-padded)
            ],
            out_specs=pl.BlockSpec((tm_eff, OUT_PAD), lambda i: (i, 0)),
        ),
        compiler_params=pltpu.CompilerParams(
            dimension_semantics=("parallel",),       # batch tiles shard across TCs (v7x)
            vmem_limit_bytes=_VMEM_LIMIT,            # big double-buffered f32 x tiles
        ),
    )(x, w1, b1, w2, b2, w3p, b3p)

    # Drop the 118 zero padding columns (rows already match B; OOB rows were masked).
    # TODO(synk): downstream consumers could take the padded (B,128) slab directly
    # and avoid this small extra slice pass.
    return out[:, :OUT_DIM]


def init_params(key):
    """Deterministic parameter init matching PyTorch nn.Linear shapes.
    PyTorch weights are (out, in); we store them as (in, out)."""
    ks = jax.random.split(key, 6)

    def linear(kw, kb, fan_in, fan_out):
        bound = 1.0 / jnp.sqrt(fan_in)
        w = jax.random.uniform(kw, (fan_in, fan_out), jnp.float32, -bound, bound)
        b = jax.random.uniform(kb, (1, fan_out), jnp.float32, -bound, bound)
        return w, b

    w1, b1 = linear(ks[0], ks[1], IN_DIM, HID)
    w2, b2 = linear(ks[2], ks[3], HID, HID)
    w3, b3 = linear(ks[4], ks[5], HID, OUT_DIM)
    return {"w1": w1, "b1": b1, "w2": w2, "b2": b2, "w3": w3, "b3": b3}


def reference_forward(x, params):
    """Pure-JAX reference emulating the kernel's bf16-matmul / f32-accumulate numerics."""
    f32 = jnp.float32
    xb = x.astype(jnp.bfloat16).astype(f32)
    w1 = params["w1"].astype(jnp.bfloat16).astype(f32)
    w2 = params["w2"].astype(jnp.bfloat16).astype(f32)
    w3 = params["w3"].astype(jnp.bfloat16).astype(f32)
    h1 = jnp.maximum(xb @ w1 + params["b1"], 0.0).astype(jnp.bfloat16).astype(f32)
    h2 = jnp.maximum(h1 @ w2 + params["b2"], 0.0).astype(jnp.bfloat16).astype(f32)
    return h2 @ w3 + params["b3"]


if __name__ == "__main__":
    key = jax.random.PRNGKey(0)
    k_param, k_x = jax.random.split(key)

    params = init_params(k_param)
    fwd = jax.jit(lambda xx: alicenet_forward(xx, params))

    # Small aligned batch.
    B = 32
    x = jax.random.normal(k_x, (B, IN_DIM), jnp.float32)
    out = jax.block_until_ready(fwd(x))
    ref = reference_forward(x, params)
    assert out.shape == (B, OUT_DIM)
    assert jnp.allclose(out, ref, atol=2e-2, rtol=2e-2), "mismatch vs pure-JAX reference"

    # Non-tile-multiple batch exercises the masked remainder-tile path (no padding pass).
    B2 = 20
    x2 = jax.random.normal(jax.random.PRNGKey(1), (B2, IN_DIM), jnp.float32)
    out2 = jax.block_until_ready(fwd(x2))
    ref2 = reference_forward(x2, params)
    assert out2.shape == (B2, OUT_DIM)
    assert jnp.allclose(out2, ref2, atol=2e-2, rtol=2e-2), "mismatch on remainder batch"

    print("KERNEL_OK")
</pallas_src>

<mosaic_0001>
module attributes {stable_mosaic.version = 11 : i64} {
  func.func @mlp_kernel(%arg0: i32, %arg1: memref<32x784xf32, #tpu.memory_space<vmem>>, %arg2: memref<784x128xbf16, #tpu.memory_space<vmem>>, %arg3: memref<1x128xf32, #tpu.memory_space<vmem>>, %arg4: memref<128x128xbf16, #tpu.memory_space<vmem>>, %arg5: memref<1x128xf32, #tpu.memory_space<vmem>>, %arg6: memref<128x128xbf16, #tpu.memory_space<vmem>>, %arg7: memref<1x128xf32, #tpu.memory_space<vmem>>, %arg8: memref<32x128xf32, #tpu.memory_space<vmem>>) attributes {dimension_semantics = [#tpu.dimension_semantics<parallel>], iteration_bounds = array<i64: 1>, scalar_prefetch = 0 : i64, scratch_operands = 0 : i64, tpu.core_type = #tpu.core_type<tc>, window_params = [{transform_indices = @transform_0, window_bounds = array<i64: 32, 784>}, {pipeline_mode = #tpu.pipeline_mode<synchronous>, transform_indices = @transform_1, window_bounds = array<i64: 784, 128>}, {pipeline_mode = #tpu.pipeline_mode<synchronous>, transform_indices = @transform_2, window_bounds = array<i64: 1, 128>}, {pipeline_mode = #tpu.pipeline_mode<synchronous>, transform_indices = @transform_3, window_bounds = array<i64: 128, 128>}, {pipeline_mode = #tpu.pipeline_mode<synchronous>, transform_indices = @transform_4, window_bounds = array<i64: 1, 128>}, {pipeline_mode = #tpu.pipeline_mode<synchronous>, transform_indices = @transform_5, window_bounds = array<i64: 128, 128>}, {pipeline_mode = #tpu.pipeline_mode<synchronous>, transform_indices = @transform_6, window_bounds = array<i64: 1, 128>}, {transform_indices = @transform_7, window_bounds = array<i64: 32, 128>}]} {
    %c0 = arith.constant 0 : index
    %c0_0 = arith.constant 0 : index
    %0 = vector.load %arg1[%c0, %c0_0] : memref<32x784xf32, #tpu.memory_space<vmem>>, vector<32x784xf32>
    %1 = arith.truncf %0 : vector<32x784xf32> to vector<32x784xbf16>
    %c0_1 = arith.constant 0 : index
    %c0_2 = arith.constant 0 : index
    %2 = vector.load %arg2[%c0_1, %c0_2] : memref<784x128xbf16, #tpu.memory_space<vmem>>, vector<784x128xbf16>
    %cst = arith.constant dense<0.000000e+00> : vector<32x128xf32>
    %3 = tpu.matmul %1, %2, %cst {dimension_numbers = #tpu.dot_dimension_numbers<[1], [0], [0], [1], [0, 0, 1, 1], [], []>} : vector<32x784xbf16>, vector<784x128xbf16>, vector<32x128xf32> -> vector<32x128xf32>
    %c0_3 = arith.constant 0 : index
    %c0_4 = arith.constant 0 : index
    %4 = vector.load %arg3[%c0_3, %c0_4] : memref<1x128xf32, #tpu.memory_space<vmem>>, vector<1x128xf32>
    %5 = vector.broadcast %4 : vector<1x128xf32> to vector<32x128xf32>
    %6 = arith.addf %3, %5 : vector<32x128xf32>
    %cst_5 = arith.constant 0.000000e+00 : f32
    %7 = vector.broadcast %cst_5 : f32 to vector<32x128xf32>
    %8 = arith.maximumf %6, %7 : vector<32x128xf32>
    %9 = arith.truncf %8 : vector<32x128xf32> to vector<32x128xbf16>
    %c0_6 = arith.constant 0 : index
    %c0_7 = arith.constant 0 : index
    %10 = vector.load %arg4[%c0_6, %c0_7] : memref<128x128xbf16, #tpu.memory_space<vmem>>, vector<128x128xbf16>
    %cst_8 = arith.constant dense<0.000000e+00> : vector<32x128xf32>
    %11 = tpu.matmul %9, %10, %cst_8 {dimension_numbers = #tpu.dot_dimension_numbers<[1], [0], [0], [1], [0, 0, 1, 1], [], []>} : vector<32x128xbf16>, vector<128x128xbf16>, vector<32x128xf32> -> vector<32x128xf32>
    %c0_9 = arith.constant 0 : index
    %c0_10 = arith.constant 0 : index
    %12 = vector.load %arg5[%c0_9, %c0_10] : memref<1x128xf32, #tpu.memory_space<vmem>>, vector<1x128xf32>
    %13 = vector.broadcast %12 : vector<1x128xf32> to vector<32x128xf32>
    %14 = arith.addf %11, %13 : vector<32x128xf32>
    %cst_11 = arith.constant 0.000000e+00 : f32
    %15 = vector.broadcast %cst_11 : f32 to vector<32x128xf32>
    %16 = arith.maximumf %14, %15 : vector<32x128xf32>
    %17 = arith.truncf %16 : vector<32x128xf32> to vector<32x128xbf16>
    %c0_12 = arith.constant 0 : index
    %c0_13 = arith.constant 0 : index
    %18 = vector.load %arg6[%c0_12, %c0_13] : memref<128x128xbf16, #tpu.memory_space<vmem>>, vector<128x128xbf16>
    %cst_14 = arith.constant dense<0.000000e+00> : vector<32x128xf32>
    %19 = tpu.matmul %17, %18, %cst_14 {dimension_numbers = #tpu.dot_dimension_numbers<[1], [0], [0], [1], [0, 0, 1, 1], [], []>} : vector<32x128xbf16>, vector<128x128xbf16>, vector<32x128xf32> -> vector<32x128xf32>
    %c0_15 = arith.constant 0 : index
    %c0_16 = arith.constant 0 : index
    %20 = vector.load %arg7[%c0_15, %c0_16] : memref<1x128xf32, #tpu.memory_space<vmem>>, vector<1x128xf32>
    %21 = vector.broadcast %20 : vector<1x128xf32> to vector<32x128xf32>
    %22 = arith.addf %19, %21 : vector<32x128xf32>
    %c0_17 = arith.constant 0 : index
    %c0_18 = arith.constant 0 : index
    %23 = vector.load %arg8[%c0_17, %c0_18] : memref<32x128xf32, #tpu.memory_space<vmem>>, vector<32x128xf32>
    tpu.vector_store %arg8[%c0_17, %c0_18], %22 {strides = array<i32>} : memref<32x128xf32, #tpu.memory_space<vmem>>, vector<32x128xf32>,
    return
  }
  func.func @transform_0(%arg0: i32) -> (i32, i32) {
    %c0_i32 = arith.constant 0 : i32
    %c0_i32_0 = arith.constant 0 : i32
    return %arg0, %c0_i32 : i32, i32
  }
  func.func @transform_1(%arg0: i32) -> (i32, i32) {
    %c0_i32 = arith.constant 0 : i32
    %c0_i32_0 = arith.constant 0 : i32
    %c0_i32_1 = arith.constant 0 : i32
    return %c0_i32, %c0_i32_0 : i32, i32
  }
  func.func @transform_2(%arg0: i32) -> (i32, i32) {
    %c0_i32 = arith.constant 0 : i32
    %c0_i32_0 = arith.constant 0 : i32
    %c0_i32_1 = arith.constant 0 : i32
    return %c0_i32, %c0_i32_0 : i32, i32
  }
  func.func @transform_3(%arg0: i32) -> (i32, i32) {
    %c0_i32 = arith.constant 0 : i32
    %c0_i32_0 = arith.constant 0 : i32
    %c0_i32_1 = arith.constant 0 : i32
    return %c0_i32, %c0_i32_0 : i32, i32
  }
  func.func @transform_4(%arg0: i32) -> (i32, i32) {
    %c0_i32 = arith.constant 0 : i32
    %c0_i32_0 = arith.constant 0 : i32
    %c0_i32_1 = arith.constant 0 : i32
    return %c0_i32, %c0_i32_0 : i32, i32
  }
  func.func @transform_5(%arg0: i32) -> (i32, i32) {
    %c0_i32 = arith.constant 0 : i32
    %c0_i32_0 = arith.constant 0 : i32
    %c0_i32_1 = arith.constant 0 : i32
    return %c0_i32, %c0_i32_0 : i32, i32
  }
  func.func @transform_6(%arg0: i32) -> (i32, i32) {
    %c0_i32 = arith.constant 0 : i32
    %c0_i32_0 = arith.constant 0 : i32
    %c0_i32_1 = arith.constant 0 : i32
    return %c0_i32, %c0_i32_0 : i32, i32
  }
  func.func @transform_7(%arg0: i32) -> (i32, i32) {
    %c0_i32 = arith.constant 0 : i32
    %c0_i32_0 = arith.constant 0 : i32
    return %arg0, %c0_i32 : i32, i32
  }
}

</mosaic_0001>

<llo_original>
// kernel: _lambda_.1
$region0: #{_lambda_.1}
  #allocation0 [shape = 'u32[]', space=smem, size = 0x4, offset = 0x4, fixed_abs, tag = 'smem constant byte address 0x4 - core index']
  #allocation1 [shape = 'u32[72,128]{1,0:T(1,128)}', space=vmem, size = 0x9000, scoped, tag = 'internal scratch']
  %s0 = inlined_call_operand.vmem [shape: f32[32,784], index: 0, kind: input, shape index: {}]
  %s1 = inlined_call_operand.hbm [shape: bf16[784,128], index: 1, kind: input, shape index: {}]
  %s2 = inlined_call_operand.vmem [shape: f32[1,128], index: 2, kind: input, shape index: {}]
  %s3 = inlined_call_operand.hbm [shape: bf16[128,128], index: 3, kind: input, shape index: {}]
  %s4 = inlined_call_operand.vmem [shape: f32[1,128], index: 4, kind: input, shape index: {}]
  %s5 = inlined_call_operand.vmem [shape: bf16[128,128], index: 5, kind: input, shape index: {}]
  %s6 = inlined_call_operand.vmem [shape: f32[1,128], index: 6, kind: input, shape index: {}]
  %s7 = inlined_call_operand.vmem [shape: f32[32,128], index: 7, kind: output, shape index: {}]
  %s8 = sld [smem:[#allocation0]]
  $region46: #{_lambda_.1} parent=0
    _
  %s10 = ssub.s32 1, %s8
  %s11 = scalar_select 0, %s10, %s8
  $region1: #{_lambda_.1} parent=0
    #allocation2 [shape = 'u8[200704]{0}', space=vmem, size = 0x31000, scoped, tag = 'input window, operand 1, single buffered']
    #allocation3 [shape = 's32[1]{0}', space=sflag, size = 0x4, scoped, tag = 'scoped memory for _lambda_.1']
    #allocation4 [shape = 'u8[32768]{0}', space=vmem, size = 0x8000, scoped, tag = 'input window, operand 3, single buffered']
    #allocation5 [shape = 's32[1]{0}', space=sflag, size = 0x4, scoped, tag = 'scoped memory for _lambda_.1']
    %12 = vsyncpa [#allocation3], 0
    %13 = vsyncpa [#allocation5], 0
    // Predicated region
    $region2: #{_lambda_.1} parent=1 // pred_check
      _
    $region3: #{_lambda_.1} parent=1 // pred_check_branch
      %15 = sbr.rel (0) target = $region5
    $region4: #{_lambda_.1} parent=1 // pred_region
      _
    $region5: #{_lambda_.1} parent=1 // pred_fallthru
      _
    // Predicated region
    $region6: #{_lambda_.1} parent=1 // pred_check
      _
    $region7: #{_lambda_.1} parent=1 // pred_check_branch
      %17 = sbr.rel (0) target = $region9
    $region8: #{_lambda_.1} parent=1 // pred_region
      %19 = vsyncadd [#allocation3], 0
      %s20 = sshll.u32 %s1, 4
      %s21 = int_to_ptr.hbm [resolvable:$true] %s20
      %s22 = sshll.u32 [#allocation2], 4
      %s23 = int_to_ptr.vmem [resolvable:$true] %s22
      %28 = dma.hbm_to_vmem [thread:$0]  %s21, 6272, %s23, [#allocation3], 64, 64, 4
    $region9: #{_lambda_.1} parent=1 // pred_fallthru
      _
    // Predicated region
    $region10: #{_lambda_.1} parent=1 // pred_check
      _
    $region11: #{_lambda_.1} parent=1 // pred_check_branch
      %30 = sbr.rel (0) target = $region13
    $region12: #{_lambda_.1} parent=1 // pred_region
      _
    $region13: #{_lambda_.1} parent=1 // pred_fallthru
      _
    // Predicated region
    $region14: #{_lambda_.1} parent=1 // pred_check
      _
    $region15: #{_lambda_.1} parent=1 // pred_check_branch
      %32 = sbr.rel (0) target = $region17
    $region16: #{_lambda_.1} parent=1 // pred_region
      %34 = vsyncadd [#allocation5], 0
      %s35 = sshll.u32 %s3, 4
      %s36 = int_to_ptr.hbm [resolvable:$true] %s35
      %s37 = sshll.u32 [#allocation4], 4
      %s38 = int_to_ptr.vmem [resolvable:$true] %s37
      %43 = dma.hbm_to_vmem [thread:$0]  %s36, 1024, %s38, [#allocation5], 64, 64, 4
    $region17: #{_lambda_.1} parent=1 // pred_fallthru
      _
    // Predicated region
    $region18: #{_lambda_.1} parent=1 // pred_check
      _
    $region19: #{_lambda_.1} parent=1 // pred_check_branch
      %45 = sbr.rel (0) target = $region21
    $region20: #{_lambda_.1} parent=1 // pred_region
      _
    $region21: #{_lambda_.1} parent=1 // pred_fallthru
      _
    // Predicated region
    $region22: #{_lambda_.1} parent=1 // pred_check
      _
    $region23: #{_lambda_.1} parent=1 // pred_check_branch
      %47 = sbr.rel (0) target = $region25
    $region24: #{_lambda_.1} parent=1 // pred_region
      _
    $region25: #{_lambda_.1} parent=1 // pred_fallthru
      _
    // Predicated region
    $region26: #{_lambda_.1} parent=1 // pred_check
      _
    $region27: #{_lambda_.1} parent=1 // pred_check_branch
      %49 = sbr.rel (0) target = $region29
    $region28: #{_lambda_.1} parent=1 // pred_region
      _
    $region29: #{_lambda_.1} parent=1 // pred_fallthru
      _
    // Predicated region
    $region30: #{_lambda_.1} parent=1 // pred_check
      _
    $region31: #{_lambda_.1} parent=1 // pred_check_branch
      %51 = sbr.rel (0) target = $region33
    $region32: #{_lambda_.1} parent=1 // pred_region
      %53 = dma.done [#allocation3], 6272
    $region33: #{_lambda_.1} parent=1 // pred_fallthru
      _
    // Predicated region
    $region34: #{_lambda_.1} parent=1 // pred_check
      _
    $region35: #{_lambda_.1} parent=1 // pred_check_branch
      %55 = sbr.rel (0) target = $region37
    $region36: #{_lambda_.1} parent=1 // pred_region
      %57 = dma.done [#allocation5], 1024
    $region37: #{_lambda_.1} parent=1 // pred_fallthru
      _
    %v59 = vld [vmem:[%s0] sm:$0xff]
    %v60 = vld [vmem:[%s0 + $0x8] sm:$0xff]
    %v61 = vld [vmem:[%s0 + $0x10] sm:$0xff]
    %v62 = vld [vmem:[%s0 + $0x18] sm:$0xff]
    %v63 = vld [vmem:[%s0 + $0x20] sm:$0xff]
    %v64 = vld [vmem:[%s0 + $0x28] sm:$0xff]
    %v65 = vld [vmem:[%s0 + $0x30] sm:$0xff]
    %v66 = vld [vmem:[%s0 + $0x38] sm:$0xff]
    %v67 = vld [vmem:[%s0 + $0x40] sm:$0xff]
    %v68 = vld [vmem:[%s0 + $0x48] sm:$0xff]
    %v69 = vld [vmem:[%s0 + $0x50] sm:$0xff]
    %v70 = vld [vmem:[%s0 + $0x58] sm:$0xff]
    %v71 = vld [vmem:[%s0 + $0x60] sm:$0xff]
    %v72 = vld [vmem:[%s0 + $0x68] sm:$0xff]
    %v73 = vld [vmem:[%s0 + $0x70] sm:$0xff]
    %v74 = vld [vmem:[%s0 + $0x78] sm:$0xff]
    %v75 = vld [vmem:[%s0 + $0x80] sm:$0xff]
    %v76 = vld [vmem:[%s0 + $0x88] sm:$0xff]
    %v77 = vld [vmem:[%s0 + $0x90] sm:$0xff]
    %v78 = vld [vmem:[%s0 + $0x98] sm:$0xff]
    %v79 = vld [vmem:[%s0 + $0xa0] sm:$0xff]
    %v80 = vld [vmem:[%s0 + $0xa8] sm:$0xff]
    %v81 = vld [vmem:[%s0 + $0xb0] sm:$0xff]
    %v82 = vld [vmem:[%s0 + $0xb8] sm:$0xff]
    %v83 = vld [vmem:[%s0 + $0xc0] sm:$0xff]
    %v84 = vld [vmem:[%s0 + $0xc8] sm:$0xff]
    %v85 = vld [vmem:[%s0 + $0xd0] sm:$0xff]
    %v86 = vld [vmem:[%s0 + $0xd8] sm:$0xff]
    %v87 = vpack.c.bf16 %v66, %v59
    %v88 = vpack.c.bf16 %v67, %v60
    %v89 = vpack.c.bf16 %v68, %v61
    %v90 = vpack.c.bf16 %v69, %v62
    %v91 = vpack.c.bf16 %v70, %v63
    %v92 = vpack.c.bf16 %v71, %v64
    %v93 = vpack.c.bf16 %v72, %v65
    %v94 = vpack.c.bf16 %v80, %v73
    %v95 = vpack.c.bf16 %v81, %v74
    %v96 = vpack.c.bf16 %v82, %v75
    %v97 = vpack.c.bf16 %v83, %v76
    %v98 = vpack.c.bf16 %v84, %v77
    %v99 = vpack.c.bf16 %v85, %v78
    %v100 = vpack.c.bf16 %v86, %v79
    %v101 = vld [vmem:[#allocation2] sm:$0xf]
    %v102 = vld [vmem:[#allocation2 + $0x4] sm:$0xf]
    %v103 = vld [vmem:[#allocation2 + $0x8] sm:$0xf]
    %v104 = vld [vmem:[#allocation2 + $0xc] sm:$0xf]
    %v105 = vld [vmem:[#allocation2 + $0x10] sm:$0xf]
    %v106 = vld [vmem:[#allocation2 + $0x14] sm:$0xf]
    %v107 = vld [vmem:[#allocation2 + $0x18] sm:$0xf]
    %v108 = vld [vmem:[#allocation2 + $0x1c] sm:$0xf]
    %v109 = vld [vmem:[#allocation2 + $0x20] sm:$0xf]
    %v110 = vld [vmem:[#allocation2 + $0x24] sm:$0xf]
    %v111 = vld [vmem:[#allocation2 + $0x28] sm:$0xf]
    %v112 = vld [vmem:[#allocation2 + $0x2c] sm:$0xf]
    %v113 = vld [vmem:[#allocation2 + $0x30] sm:$0xf]
    %v114 = vld [vmem:[#allocation2 + $0x34] sm:$0xf]
    %v115 = vld [vmem:[#allocation2 + $0x38] sm:$0xf]
    %v116 = vld [vmem:[#allocation2 + $0x3c] sm:$0xf]
    %v117 = vld [vmem:[#allocation2 + $0x40] sm:$0xf]
    %v118 = vld [vmem:[#allocation2 + $0x44] sm:$0xf]
    %v119 = vld [vmem:[#allocation2 + $0x48] sm:$0xf]
    %v120 = vld [vmem:[#allocation2 + $0x4c] sm:$0xf]
    %v121 = vld [vmem:[#allocation2 + $0x50] sm:$0xf]
    %v122 = vld [vmem:[#allocation2 + $0x54] sm:$0xf]
    %v123 = vld [vmem:[#allocation2 + $0x58] sm:$0xf]
    %v124 = vld [vmem:[#allocation2 + $0x5c] sm:$0xf]
    %v125 = vld [vmem:[#allocation2 + $0x60] sm:$0xf]
    %v126 = vld [vmem:[#allocation2 + $0x64] sm:$0xf]
    %v127 = vld [vmem:[#allocation2 + $0x68] sm:$0xf]
    %v128 = vld [vmem:[#allocation2 + $0x6c] sm:$0xf]
    %v129 = vld [vmem:[#allocation2 + $0x70] sm:$0xf]
    %v130 = vld [vmem:[#allocation2 + $0x74] sm:$0xf]
    %v131 = vld [vmem:[#allocation2 + $0x78] sm:$0xf]
    %v132 = vld [vmem:[#allocation2 + $0x7c] sm:$0xf]
    %v133 = vld [vmem:[#allocation2 + $0x80] sm:$0xf]
    %v134 = vld [vmem:[#allocation2 + $0x84] sm:$0xf]
    %v135 = vld [vmem:[#allocation2 + $0x88] sm:$0xf]
    %v136 = vld [vmem:[#allocation2 + $0x8c] sm:$0xf]
    %v137 = vld [vmem:[#allocation2 + $0x90] sm:$0xf]
    %v138 = vld [vmem:[#allocation2 + $0x94] sm:$0xf]
    %v139 = vld [vmem:[#allocation2 + $0x98] sm:$0xf]
    %v140 = vld [vmem:[#allocation2 + $0x9c] sm:$0xf]
    %v141 = vld [vmem:[#allocation2 + $0xa0] sm:$0xf]
    %v142 = vld [vmem:[#allocation2 + $0xa4] sm:$0xf]
    %v143 = vld [vmem:[#allocation2 + $0xa8] sm:$0xf]
    %v144 = vld [vmem:[#allocation2 + $0xac] sm:$0xf]
    %v145 = vld [vmem:[#allocation2 + $0xb0] sm:$0xf]
    %v146 = vld [vmem:[#allocation2 + $0xb4] sm:$0xf]
    %v147 = vld [vmem:[#allocation2 + $0xb8] sm:$0xf]
    %v148 = vld [vmem:[#allocation2 + $0xbc] sm:$0xf]
    %v149 = vld [vmem:[#allocation2 + $0xc0] sm:$0xf]
    %v150 = vld [vmem:[#allocation2 + $0xc4] sm:$0xf]
    %v151 = vld [vmem:[#allocation2 + $0xc8] sm:$0xf]
    %v152 = vld [vmem:[#allocation2 + $0xcc] sm:$0xf]
    %v153 = vld [vmem:[#allocation2 + $0xd0] sm:$0xf]
    %v154 = vld [vmem:[#allocation2 + $0xd4] sm:$0xf]
    %v155 = vld [vmem:[#allocation2 + $0xd8] sm:$0xf]
    %v156 = vld [vmem:[#allocation2 + $0xdc] sm:$0xf]
    %v157 = vld [vmem:[#allocation2 + $0xe0] sm:$0xf]
    %v158 = vld [vmem:[#allocation2 + $0xe4] sm:$0xf]
    %v159 = vld [vmem:[#allocation2 + $0xe8] sm:$0xf]
    %v160 = vld [vmem:[#allocation2 + $0xec] sm:$0xf]
    %v161 = vld [vmem:[#allocation2 + $0xf0] sm:$0xf]
    %v162 = vld [vmem:[#allocation2 + $0xf4] sm:$0xf]
    %v163 = vld [vmem:[#allocation2 + $0xf8] sm:$0xf]
    %v164 = vld [vmem:[#allocation2 + $0xfc] sm:$0xf]
    %v165 = vld [vmem:[#allocation2 + $0x100] sm:$0xf]
    %v166 = vld [vmem:[#allocation2 + $0x104] sm:$0xf]
    %v167 = vld [vmem:[#allocation2 + $0x108] sm:$0xf]
    %v168 = vld [vmem:[#allocation2 + $0x10c] sm:$0xf]
    %v169 = vld [vmem:[#allocation2 + $0x110] sm:$0xf]
    %v170 = vld [vmem:[#allocation2 + $0x114] sm:$0xf]
    %v171 = vld [vmem:[#allocation2 + $0x118] sm:$0xf]
    %v172 = vld [vmem:[#allocation2 + $0x11c] sm:$0xf]
    %v173 = vld [vmem:[#allocation2 + $0x120] sm:$0xf]
    %v174 = vld [vmem:[#allocation2 + $0x124] sm:$0xf]
    %v175 = vld [vmem:[#allocation2 + $0x128] sm:$0xf]
    %v176 = vld [vmem:[#allocation2 + $0x12c] sm:$0xf]
    %v177 = vld [vmem:[#allocation2 + $0x130] sm:$0xf]
    %v178 = vld [vmem:[#allocation2 + $0x134] sm:$0xf]
    %v179 = vld [vmem:[#allocation2 + $0x138] sm:$0xf]
    %v180 = vld [vmem:[#allocation2 + $0x13c] sm:$0xf]
    %v181 = vld [vmem:[#allocation2 + $0x140] sm:$0xf]
    %v182 = vld [vmem:[#allocation2 + $0x144] sm:$0xf]
    %v183 = vld [vmem:[#allocation2 + $0x148] sm:$0xf]
    %v184 = vld [vmem:[#allocation2 + $0x14c] sm:$0xf]
    %v185 = vld [vmem:[#allocation2 + $0x150] sm:$0xf]
    %v186 = vld [vmem:[#allocation2 + $0x154] sm:$0xf]
    %v187 = vld [vmem:[#allocation2 + $0x158] sm:$0xf]
    %v188 = vld [vmem:[#allocation2 + $0x15c] sm:$0xf]
    %v189 = vld [vmem:[#allocation2 + $0x160] sm:$0xf]
    %v190 = vld [vmem:[#allocation2 + $0x164] sm:$0xf]
    %v191 = vld [vmem:[#allocation2 + $0x168] sm:$0xf]
    %v192 = vld [vmem:[#allocation2 + $0x16c] sm:$0xf]
    %v193 = vld [vmem:[#allocation2 + $0x170] sm:$0xf]
    %v194 = vld [vmem:[#allocation2 + $0x174] sm:$0xf]
    %v195 = vld [vmem:[#allocation2 + $0x178] sm:$0xf]
    %v196 = vld [vmem:[#allocation2 + $0x17c] sm:$0xf]
    %v197 = vld [vmem:[#allocation2 + $0x180] sm:$0xf]
    %v198 = vld [vmem:[#allocation2 + $0x184] sm:$0xf]
    %v199 = vld [vmem:[%s2] sm:$0x1]
    %v201 = vperm.slane %v199, 0
    %v301 = vunpack.c.l.b16 %v101
    %v302 = vunpack.c.l.b16 %v102
    %v303 = vunpack.c.l.b16 %v103
    %v304 = vunpack.c.l.b16 %v104
    %v305 = vunpack.c.l.b16 %v105
    %v306 = vunpack.c.l.b16 %v106
    %v307 = vunpack.c.l.b16 %v107
    %v308 = vunpack.c.l.b16 %v108
    %v309 = vunpack.c.l.b16 %v109
    %v310 = vunpack.c.l.b16 %v110
    %v311 = vunpack.c.l.b16 %v111
    %v312 = vunpack.c.l.b16 %v112
    %v313 = vunpack.c.l.b16 %v113
    %v314 = vunpack.c.l.b16 %v114
    %v315 = vunpack.c.l.b16 %v115
    %v316 = vunpack.c.l.b16 %v116
    %v317 = vunpack.c.l.b16 %v117
    %v318 = vunpack.c.l.b16 %v118
    %v319 = vunpack.c.l.b16 %v119
    %v320 = vunpack.c.l.b16 %v120
    %v321 = vunpack.c.l.b16 %v121
    %v322 = vunpack.c.l.b16 %v122
    %v323 = vunpack.c.l.b16 %v123
    %v324 = vunpack.c.l.b16 %v124
    %v325 = vunpack.c.l.b16 %v125
    %v326 = vunpack.c.l.b16 %v126
    %v327 = vunpack.c.l.b16 %v127
    %v328 = vunpack.c.l.b16 %v128
    %v329 = vunpack.c.l.b16 %v129
    %v330 = vunpack.c.l.b16 %v130
    %v331 = vunpack.c.l.b16 %v131
    %v332 = vunpack.c.l.b16 %v132
    %v333 = vunpack.c.l.b16 %v133
    %v334 = vunpack.c.l.b16 %v134
    %v335 = vunpack.c.l.b16 %v135
    %v336 = vunpack.c.l.b16 %v136
    %v337 = vunpack.c.l.b16 %v137
    %v338 = vunpack.c.l.b16 %v138
    %v339 = vunpack.c.l.b16 %v139
    %v340 = vunpack.c.l.b16 %v140
    %v341 = vunpack.c.l.b16 %v141
    %v342 = vunpack.c.l.b16 %v142
    %v343 = vunpack.c.l.b16 %v143
    %v344 = vunpack.c.l.b16 %v144
    %v345 = vunpack.c.l.b16 %v145
    %v346 = vunpack.c.l.b16 %v146
    %v347 = vunpack.c.l.b16 %v147
    %v348 = vunpack.c.l.b16 %v148
    %v349 = vunpack.c.l.b16 %v149
    %v350 = vunpack.c.l.b16 %v150
    %v351 = vunpack.c.l.b16 %v151
    %v352 = vunpack.c.l.b16 %v152
    %v353 = vunpack.c.l.b16 %v153
    %v354 = vunpack.c.l.b16 %v154
    %v355 = vunpack.c.l.b16 %v155
    %v356 = vunpack.c.l.b16 %v156
    %v357 = vunpack.c.l.b16 %v157
    %v358 = vunpack.c.l.b16 %v158
    %v359 = vunpack.c.l.b16 %v159
    %v360 = vunpack.c.l.b16 %v160
    %v361 = vunpack.c.l.b16 %v161
    %v362 = vunpack.c.l.b16 %v162
    %v363 = vunpack.c.l.b16 %v163
    %v364 = vunpack.c.l.b16 %v164
    %v365 = vunpack.c.l.b16 %v165
    %v366 = vunpack.c.l.b16 %v166
    %v367 = vunpack.c.l.b16 %v167
    %v368 = vunpack.c.l.b16 %v168
    %v369 = vunpack.c.l.b16 %v169
    %v370 = vunpack.c.l.b16 %v170
    %v371 = vunpack.c.l.b16 %v171
    %v372 = vunpack.c.l.b16 %v172
    %v373 = vunpack.c.l.b16 %v173
    %v374 = vunpack.c.l.b16 %v174
    %v375 = vunpack.c.l.b16 %v175
    %v376 = vunpack.c.l.b16 %v176
    %v377 = vunpack.c.l.b16 %v177
    %v378 = vunpack.c.l.b16 %v178
    %v379 = vunpack.c.l.b16 %v179
    %v380 = vunpack.c.l.b16 %v180
    %v381 = vunpack.c.l.b16 %v181
    %v382 = vunpack.c.l.b16 %v182
    %v383 = vunpack.c.l.b16 %v183
    %v384 = vunpack.c.l.b16 %v184
    %v385 = vunpack.c.l.b16 %v185
    %v386 = vunpack.c.l.b16 %v186
    %v387 = vunpack.c.l.b16 %v187
    %v388 = vunpack.c.l.b16 %v188
    %v389 = vunpack.c.l.b16 %v189
    %v390 = vunpack.c.l.b16 %v190
    %v391 = vunpack.c.l.b16 %v191
    %v392 = vunpack.c.l.b16 %v192
    %v393 = vunpack.c.l.b16 %v193
    %v394 = vunpack.c.l.b16 %v194
    %v395 = vunpack.c.l.b16 %v195
    %v396 = vunpack.c.l.b16 %v196
    %v397 = vunpack.c.l.b16 %v197
    %v398 = vunpack.c.l.b16 %v198
    %v399 = vpack.c.b16 %v302, %v301
    %v400 = vpack.c.b16 %v304, %v303
    %v401 = vpack.c.b16 %v306, %v305
    %v402 = vpack.c.b16 %v308, %v307
    %v403 = vpack.c.b16 %v310, %v309
    %v404 = vpack.c.b16 %v312, %v311
    %v405 = vpack.c.b16 %v314, %v313
    %v406 = vpack.c.b16 %v316, %v315
    %v407 = vpack.c.b16 %v318, %v317
    %v408 = vpack.c.b16 %v320, %v319
    %v409 = vpack.c.b16 %v322, %v321
    %v410 = vpack.c.b16 %v324, %v323
    %v411 = vpack.c.b16 %v326, %v325
    %v412 = vpack.c.b16 %v328, %v327
    %v413 = vpack.c.b16 %v330, %v329
    %v414 = vpack.c.b16 %v332, %v331
    %v415 = vpack.c.b16 %v334, %v333
    %v416 = vpack.c.b16 %v336, %v335
    %v417 = vpack.c.b16 %v338, %v337
    %v418 = vpack.c.b16 %v340, %v339
    %v419 = vpack.c.b16 %v342, %v341
    %v420 = vpack.c.b16 %v344, %v343
    %v421 = vpack.c.b16 %v346, %v345
    %v422 = vpack.c.b16 %v348, %v347
    %v423 = vpack.c.b16 %v350, %v349
    %v424 = vpack.c.b16 %v352, %v351
    %v425 = vpack.c.b16 %v354, %v353
    %v426 = vpack.c.b16 %v356, %v355
    %v427 = vpack.c.b16 %v358, %v357
    %v428 = vpack.c.b16 %v360, %v359
    %v429 = vpack.c.b16 %v362, %v361
    %v430 = vpack.c.b16 %v364, %v363
    %v431 = vpack.c.b16 %v366, %v365
    %v432 = vpack.c.b16 %v368, %v367
    %v433 = vpack.c.b16 %v370, %v369
    %v434 = vpack.c.b16 %v372, %v371
    %v435 = vpack.c.b16 %v374, %v373
    %v436 = vpack.c.b16 %v376, %v375
    %v437 = vpack.c.b16 %v378, %v377
    %v438 = vpack.c.b16 %v380, %v379
    %v439 = vpack.c.b16 %v382, %v381
    %v440 = vpack.c.b16 %v384, %v383
    %v441 = vpack.c.b16 %v386, %v385
    %v442 = vpack.c.b16 %v388, %v387
    %v443 = vpack.c.b16 %v390, %v389
    %v444 = vpack.c.b16 %v392, %v391
    %v445 = vpack.c.b16 %v394, %v393
    %v446 = vpack.c.b16 %v396, %v395
    %v447 = vpack.c.b16 %v398, %v397
    %vm497 = vcmask 130048
    %v499 = vsel %vm497, %v93, 0
    %v502 = vsel %vm497, %v100, 0
    %504 = vmatpush.bf16.msra.mxu0 %v406
    %505 = vmatpush.bf16.msra.mxu0 %v405
    %506 = vmatpush.bf16.msra.mxu0 %v404
    %507 = vmatpush.bf16.msra.mxu0 %v403
    %508 = vmatpush.bf16.msra.mxu0 %v402
    %509 = vmatpush.bf16.msra.mxu0 %v401
    %510 = vmatpush.bf16.msra.mxu0 %v400
    %511 = vmatpush.bf16.msra.mxu0 %v399
    %512 = vmatmul.bf16.gmra.mxu0 %v87
    %v513 = vpop.f32.mrf.mxu0
    %v514 = vadd.f32 %v201, %v513
    %v515 = vpop.f32.mrf.mxu0
    %v516 = vadd.f32 %v201, %v515
    %517 = vmatmul.bf16.gmra.mxu0 %v94
    %v518 = vpop.f32.mrf.mxu0
    %v519 = vadd.f32 %v201, %v518
    %v520 = vpop.f32.mrf.mxu0
    %v521 = vadd.f32 %v201, %v520
    %522 = vdwg.mxu0
    %523 = vmatpush.bf16.msra.mxu0 %v414
    %524 = vmatpush.bf16.msra.mxu0 %v413
    %525 = vmatpush.bf16.msra.mxu0 %v412
    %526 = vmatpush.bf16.msra.mxu0 %v411
    %527 = vmatpush.bf16.msra.mxu0 %v410
    %528 = vmatpush.bf16.msra.mxu0 %v409
    %529 = vmatpush.bf16.msra.mxu0 %v408
    %530 = vmatpush.bf16.msra.mxu0 %v407
    %531 = vmatmul.bf16.gmra.mxu0 %v88
    %v532 = vpop.f32.mrf.mxu0
    %v533 = vadd.f32 %v514, %v532
    %v534 = vpop.f32.mrf.mxu0
    %v535 = vadd.f32 %v516, %v534
    %536 = vmatmul.bf16.gmra.mxu0 %v95
    %v537 = vpop.f32.mrf.mxu0
    %v538 = vadd.f32 %v519, %v537
    %v539 = vpop.f32.mrf.mxu0
    %v540 = vadd.f32 %v521, %v539
    %541 = vdwg.mxu0
    %542 = vmatpush.bf16.msra.mxu0 %v422
    %543 = vmatpush.bf16.msra.mxu0 %v421
    %544 = vmatpush.bf16.msra.mxu0 %v420
    %545 = vmatpush.bf16.msra.mxu0 %v419
    %546 = vmatpush.bf16.msra.mxu0 %v418
    %547 = vmatpush.bf16.msra.mxu0 %v417
    %548 = vmatpush.bf16.msra.mxu0 %v416
    %549 = vmatpush.bf16.msra.mxu0 %v415
    %550 = vmatmul.bf16.gmra.mxu0 %v89
    %v551 = vpop.f32.mrf.mxu0
    %v552 = vadd.f32 %v533, %v551
    %v553 = vpop.f32.mrf.mxu0
    %v554 = vadd.f32 %v535, %v553
    %555 = vmatmul.bf16.gmra.mxu0 %v96
    %v556 = vpop.f32.mrf.mxu0
    %v557 = vadd.f32 %v538, %v556
    %v558 = vpop.f32.mrf.mxu0
    %v559 = vadd.f32 %v540, %v558
    %560 = vdwg.mxu0
    %561 = vmatpush.bf16.msra.mxu0 %v430
    %562 = vmatpush.bf16.msra.mxu0 %v429
    %563 = vmatpush.bf16.msra.mxu0 %v428
    %564 = vmatpush.bf16.msra.mxu0 %v427
    %565 = vmatpush.bf16.msra.mxu0 %v426
    %566 = vmatpush.bf16.msra.mxu0 %v425
    %567 = vmatpush.bf16.msra.mxu0 %v424
    %568 = vmatpush.bf16.msra.mxu0 %v423
    %569 = vmatmul.bf16.gmra.mxu0 %v90
    %v570 = vpop.f32.mrf.mxu0
    %v571 = vadd.f32 %v552, %v570
    %v572 = vpop.f32.mrf.mxu0
    %v573 = vadd.f32 %v554, %v572
    %574 = vmatmul.bf16.gmra.mxu0 %v97
    %v575 = vpop.f32.mrf.mxu0
    %v576 = vadd.f32 %v557, %v575
    %v577 = vpop.f32.mrf.mxu0
    %v578 = vadd.f32 %v559, %v577
    %579 = vdwg.mxu0
    %580 = vmatpush.bf16.msra.mxu0 %v438
    %581 = vmatpush.bf16.msra.mxu0 %v437
    %582 = vmatpush.bf16.msra.mxu0 %v436
    %583 = vmatpush.bf16.msra.mxu0 %v435
    %584 = vmatpush.bf16.msra.mxu0 %v434
    %585 = vmatpush.bf16.msra.mxu0 %v433
    %586 = vmatpush.bf16.msra.mxu0 %v432
    %587 = vmatpush.bf16.msra.mxu0 %v431
    %588 = vmatmul.bf16.gmra.mxu0 %v91
    %v589 = vpop.f32.mrf.mxu0
    %v590 = vadd.f32 %v571, %v589
    %v591 = vpop.f32.mrf.mxu0
    %v592 = vadd.f32 %v573, %v591
    %593 = vmatmul.bf16.gmra.mxu0 %v98
    %v594 = vpop.f32.mrf.mxu0
    %v595 = vadd.f32 %v576, %v594
    %v596 = vpop.f32.mrf.mxu0
    %v597 = vadd.f32 %v578, %v596
    %598 = vdwg.mxu0
    %599 = vmatpush.bf16.msra.mxu0 %v446
    %600 = vmatpush.bf16.msra.mxu0 %v445
    %601 = vmatpush.bf16.msra.mxu0 %v444
    %602 = vmatpush.bf16.msra.mxu0 %v443
    %603 = vmatpush.bf16.msra.mxu0 %v442
    %604 = vmatpush.bf16.msra.mxu0 %v441
    %605 = vmatpush.bf16.msra.mxu0 %v440
    %606 = vmatpush.bf16.msra.mxu0 %v439
    %607 = vmatmul.bf16.gmra.mxu0 %v92
    %v608 = vpop.f32.mrf.mxu0
    %v609 = vadd.f32 %v590, %v608
    %v610 = vpop.f32.mrf.mxu0
    %v611 = vadd.f32 %v592, %v610
    %612 = vmatmul.bf16.gmra.mxu0 %v99
    %v613 = vpop.f32.mrf.mxu0
    %v614 = vadd.f32 %v595, %v613
    %v615 = vpop.f32.mrf.mxu0
    %v616 = vadd.f32 %v597, %v615
    %617 = vdwg.mxu0
    %618 = vmatpush.bf16.msra.mxu0 0
    %619 = vmatpush.bf16.msra.mxu0 0
    %620 = vmatpush.bf16.msra.mxu0 0
    %621 = vmatpush.bf16.msra.mxu0 0
    %622 = vmatpush.bf16.msra.mxu0 0
    %623 = vmatpush.bf16.msra.mxu0 0
    %624 = vmatpush.bf16.msra.mxu0 0
    %625 = vmatpush.bf16.msra.mxu0 %v447
    %626 = vmatmul.bf16.gmra.mxu0 %v499
    %v627 = vpop.f32.mrf.mxu0
    %v628 = vadd.f32 %v609, %v627
    %v629 = vpop.f32.mrf.mxu0
    %v630 = vadd.f32 %v611, %v629
    %631 = vmatmul.bf16.gmra.mxu0 %v502
    %v632 = vpop.f32.mrf.mxu0
    %v633 = vadd.f32 %v614, %v632
    %v634 = vpop.f32.mrf.mxu0
    %v635 = vadd.f32 %v616, %v634
    %636 = vdwg.mxu0
    %v637 = vmax.f32 %v628, 0.0
    %v638 = vmax.f32 %v630, 0.0
    %v639 = vmax.f32 %v633, 0.0
    %v640 = vmax.f32 %v635, 0.0
    %v641 = vpack.c.bf16 %v638, %v637
    %v642 = vpack.c.bf16 %v640, %v639
    %v643 = vld [vmem:[#allocation4] sm:$0xf]
    %v644 = vld [vmem:[#allocation4 + $0x4] sm:$0xf]
    %v645 = vld [vmem:[#allocation4 + $0x8] sm:$0xf]
    %v646 = vld [vmem:[#allocation4 + $0xc] sm:$0xf]
    %v647 = vld [vmem:[#allocation4 + $0x10] sm:$0xf]
    %v648 = vld [vmem:[#allocation4 + $0x14] sm:$0xf]
    %v649 = vld [vmem:[#allocation4 + $0x18] sm:$0xf]
    %v650 = vld [vmem:[#allocation4 + $0x1c] sm:$0xf]
    %v651 = vld [vmem:[#allocation4 + $0x20] sm:$0xf]
    %v652 = vld [vmem:[#allocation4 + $0x24] sm:$0xf]
    %v653 = vld [vmem:[#allocation4 + $0x28] sm:$0xf]
    %v654 = vld [vmem:[#allocation4 + $0x2c] sm:$0xf]
    %v655 = vld [vmem:[#allocation4 + $0x30] sm:$0xf]
    %v656 = vld [vmem:[#allocation4 + $0x34] sm:$0xf]
    %v657 = vld [vmem:[#allocation4 + $0x38] sm:$0xf]
    %v658 = vld [vmem:[#allocation4 + $0x3c] sm:$0xf]
    %v659 = vld [vmem:[%s4] sm:$0x1]
    %v661 = vperm.slane %v659, 0
    %v679 = vunpack.c.l.b16 %v643
    %v680 = vunpack.c.l.b16 %v644
    %v681 = vunpack.c.l.b16 %v645
    %v682 = vunpack.c.l.b16 %v646
    %v683 = vunpack.c.l.b16 %v647
    %v684 = vunpack.c.l.b16 %v648
    %v685 = vunpack.c.l.b16 %v649
    %v686 = vunpack.c.l.b16 %v650
    %v687 = vunpack.c.l.b16 %v651
    %v688 = vunpack.c.l.b16 %v652
    %v689 = vunpack.c.l.b16 %v653
    %v690 = vunpack.c.l.b16 %v654
    %v691 = vunpack.c.l.b16 %v655
    %v692 = vunpack.c.l.b16 %v656
    %v693 = vunpack.c.l.b16 %v657
    %v694 = vunpack.c.l.b16 %v658
    %v695 = vpack.c.b16 %v680, %v679
    %v696 = vpack.c.b16 %v682, %v681
    %v697 = vpack.c.b16 %v684, %v683
    %v698 = vpack.c.b16 %v686, %v685
    %v699 = vpack.c.b16 %v688, %v687
    %v700 = vpack.c.b16 %v690, %v689
    %v701 = vpack.c.b16 %v692, %v691
    %v702 = vpack.c.b16 %v694, %v693
    %711 = vmatpush.bf16.msra.mxu0 %v702
    %712 = vmatpush.bf16.msra.mxu0 %v701
    %713 = vmatpush.bf16.msra.mxu0 %v700
    %714 = vmatpush.bf16.msra.mxu0 %v699
    %715 = vmatpush.bf16.msra.mxu0 %v698
    %716 = vmatpush.bf16.msra.mxu0 %v697
    %717 = vmatpush.bf16.msra.mxu0 %v696
    %718 = vmatpush.bf16.msra.mxu0 %v695
    %719 = vmatmul.bf16.gmra.mxu0 %v641
    %v720 = vpop.f32.mrf.mxu0
    %v721 = vadd.f32 %v661, %v720
    %v722 = vpop.f32.mrf.mxu0
    %v723 = vadd.f32 %v661, %v722
    %724 = vmatmul.bf16.gmra.mxu0 %v642
    %v725 = vpop.f32.mrf.mxu0
    %v726 = vadd.f32 %v661, %v725
    %v727 = vpop.f32.mrf.mxu0
    %v728 = vadd.f32 %v661, %v727
    %729 = vdwg.mxu0
    %v730 = vmax.f32 %v721, 0.0
    %v731 = vmax.f32 %v723, 0.0
    %v732 = vmax.f32 %v726, 0.0
    %v733 = vmax.f32 %v728, 0.0
    %v734 = vpack.c.bf16 %v731, %v730
    %v735 = vpack.c.bf16 %v733, %v732
    %v736 = vld [vmem:[%s5] sm:$0xf]
    %v737 = vld [vmem:[%s5 + $0x4] sm:$0xf]
    %v738 = vld [vmem:[%s5 + $0x8] sm:$0xf]
    %v739 = vld [vmem:[%s5 + $0xc] sm:$0xf]
    %v740 = vld [vmem:[%s5 + $0x10] sm:$0xf]
    %v741 = vld [vmem:[%s5 + $0x14] sm:$0xf]
    %v742 = vld [vmem:[%s5 + $0x18] sm:$0xf]
    %v743 = vld [vmem:[%s5 + $0x1c] sm:$0xf]
    %v744 = vld [vmem:[%s5 + $0x20] sm:$0xf]
    %v745 = vld [vmem:[%s5 + $0x24] sm:$0xf]
    %v746 = vld [vmem:[%s5 + $0x28] sm:$0xf]
    %v747 = vld [vmem:[%s5 + $0x2c] sm:$0xf]
    %v748 = vld [vmem:[%s5 + $0x30] sm:$0xf]
    %v749 = vld [vmem:[%s5 + $0x34] sm:$0xf]
    %v750 = vld [vmem:[%s5 + $0x38] sm:$0xf]
    %v751 = vld [vmem:[%s5 + $0x3c] sm:$0xf]
    %v752 = vld [vmem:[%s6] sm:$0x1]
    %v754 = vperm.slane %v752, 0
    %v772 = vunpack.c.l.b16 %v736
    %v773 = vunpack.c.l.b16 %v737
    %v774 = vunpack.c.l.b16 %v738
    %v775 = vunpack.c.l.b16 %v739
    %v776 = vunpack.c.l.b16 %v740
    %v777 = vunpack.c.l.b16 %v741
    %v778 = vunpack.c.l.b16 %v742
    %v779 = vunpack.c.l.b16 %v743
    %v780 = vunpack.c.l.b16 %v744
    %v781 = vunpack.c.l.b16 %v745
    %v782 = vunpack.c.l.b16 %v746
    %v783 = vunpack.c.l.b16 %v747
    %v784 = vunpack.c.l.b16 %v748
    %v785 = vunpack.c.l.b16 %v749
    %v786 = vunpack.c.l.b16 %v750
    %v787 = vunpack.c.l.b16 %v751
    %v788 = vpack.c.b16 %v773, %v772
    %v789 = vpack.c.b16 %v775, %v774
    %v790 = vpack.c.b16 %v777, %v776
    %v791 = vpack.c.b16 %v779, %v778
    %v792 = vpack.c.b16 %v781, %v780
    %v793 = vpack.c.b16 %v783, %v782
    %v794 = vpack.c.b16 %v785, %v784
    %v795 = vpack.c.b16 %v787, %v786
    %804 = vmatpush.bf16.msra.mxu0 %v795
    %805 = vmatpush.bf16.msra.mxu0 %v794
    %806 = vmatpush.bf16.msra.mxu0 %v793
    %807 = vmatpush.bf16.msra.mxu0 %v792
    %808 = vmatpush.bf16.msra.mxu0 %v791
    %809 = vmatpush.bf16.msra.mxu0 %v790
    %810 = vmatpush.bf16.msra.mxu0 %v789
    %811 = vmatpush.bf16.msra.mxu0 %v788
    %812 = vmatmul.bf16.gmra.mxu0 %v734
    %v813 = vpop.f32.mrf.mxu0
    %v814 = vadd.f32 %v754, %v813
    %v815 = vpop.f32.mrf.mxu0
    %v816 = vadd.f32 %v754, %v815
    %817 = vmatmul.bf16.gmra.mxu0 %v735
    %v818 = vpop.f32.mrf.mxu0
    %v819 = vadd.f32 %v754, %v818
    %v820 = vpop.f32.mrf.mxu0
    %v821 = vadd.f32 %v754, %v820
    %822 = vdwg.mxu0
    %823 = vst [vmem:[%s7] sm:$0xff] %v814
    %824 = vst [vmem:[%s7 + $0x8] sm:$0xff] %v816
    %825 = vst [vmem:[%s7 + $0x10] sm:$0xff] %v819
    %826 = vst [vmem:[%s7 + $0x18] sm:$0xff] %v821
    // Predicated region
    $region38: #{_lambda_.1} parent=1 // pred_check
      _
    $region39: #{_lambda_.1} parent=1 // pred_check_branch
      %828 = sbr.rel (0) target = $region41
    $region40: #{_lambda_.1} parent=1 // pred_region
      _
    $region41: #{_lambda_.1} parent=1 // pred_fallthru
      _
    // Predicated region
    $region42: #{_lambda_.1} parent=1 // pred_check
      _
    $region43: #{_lambda_.1} parent=1 // pred_check_branch
      %830 = sbr.rel (0) target = $region45
    $region44: #{_lambda_.1} parent=1 // pred_region
      _
    $region45: #{_lambda_.1} parent=1 // pred_fallthru
      _
    %831 = vsyncpa [#allocation3], 1
    %832 = vsyncpa [#allocation5], 1

</llo_original>
